<compile_context>
chip_gen: v6e
topology: v6e:2x2x1
jax: 0.10.0
libtpu: 0.0.40
codegen_flags: <defaults>
</compile_context>

<pallas_src>
import functools

import jax
import jax.numpy as jnp
from jax.experimental import pallas as pl
from jax.experimental.pallas import tpu as pltpu


def probnet_kernel(x_ref, w1_ref, b1_ref, w2_ref, b2_ref, out_ref):
    # Layer 1 (MXU): [tr, 128] @ [128, G*H] -> [tr, G*H]; lane j*H+h is hidden
    # unit h of batch element (row*G + j).  Bias + ReLU on the VPU.
    h = jnp.dot(x_ref[...], w1_ref[...], preferred_element_type=jnp.float32)
    h = jnp.maximum(h + b1_ref[...], 0.0)
    # Layer 2 (MXU, tiny): [tr, G*H] @ [G*H, G] -> [tr, G]; lane j is batch
    # element (row*G + j)'s scalar output.
    o = jnp.dot(h, w2_ref[...], preferred_element_type=jnp.float32)
    out_ref[...] = (o + b2_ref[0, 0]).astype(out_ref.dtype)


def _choose_tile_rows(num_rows, block_rows):
    """Packed-row tile: sublane aligned, >= 2 tiles when possible (v7x megacore)."""
    if num_rows < 16:
        return num_rows                      # single block covering the array
    tr = min(block_rows, (num_rows + 1) // 2)
    return max(8, (tr // 8) * 8)


def _pack_params(w1, b1, w2, b2, G, x_dtype):
    """Build block-diagonal packed weights (tiny, one-time; hoistable under jit)."""
    D, H = w1.shape
    eye_g = jnp.eye(G, dtype=jnp.float32)
    # w1_bd[g*D + d, j*H + h] = w1[d, h] if g == j else 0        -> [128, G*H]
    w1_bd = jnp.einsum("gj,dh->gdjh", eye_g, w1.astype(jnp.float32))
    w1_bd = w1_bd.reshape(G * D, G * H).astype(x_dtype)
    # b1_p[0, j*H + h] = b1[h]                                    -> [1, G*H]
    b1_p = jnp.tile(b1.reshape(1, H).astype(jnp.float32), (1, G))
    # w2_bd[j*H + h, m] = w2[h] if j == m else 0                  -> [G*H, G]
    w2_bd = jnp.einsum("jm,h->jhm", eye_g, w2.astype(jnp.float32)).reshape(G * H, G)
    b2_p = jnp.asarray(b2, jnp.float32).reshape(1, 1)
    return w1_bd, b1_p, w2_bd, b2_p


@functools.partial(jax.jit, static_argnames=("block_rows",))
def probnet_forward(x, w1, b1, w2, b2, *, block_rows=2048):
    """Fused ProbNet forward.

    x : [B, D] (D = state_dim + action_dim), w1 : [D, H] (= torch fc1.weight.T),
    b1 : [H], w2 : [H] (= torch fc2.weight[0]), b2 : scalar.  Returns [B, 1] f32.
    """
    B, D = x.shape
    H = w1.shape[1]
    assert 128 % D == 0, "feature dim must divide 128 (see TODO for general D)"
    G = 128 // D                      # batch elements packed per 128-lane row
    assert B % G == 0, "batch must be a multiple of 128 // feature_dim"
    R = B // G                        # packed rows
    GH = G * H

    x_packed = x.reshape(R, G * D)    # zero-cost: row-major [B, D] == [R, 128]
    w1_bd, b1_p, w2_bd, b2_p = _pack_params(w1, b1, w2, b2, G, x.dtype)

    tr = _choose_tile_rows(R, block_rows)
    num_tiles = pl.cdiv(R, tr)

    cost = pl.CostEstimate(
        flops=2 * R * 128 * GH + 2 * R * GH * G,
        transcendentals=0,
        bytes_accessed=x.size * x.dtype.itemsize
        + 4 * (128 * GH + GH + GH * G + 1 + R * G),
    )

    out = pl.pallas_call(
        probnet_kernel,
        out_shape=jax.ShapeDtypeStruct((R, G), jnp.float32),
        grid=(num_tiles,),
        in_specs=[
            pl.BlockSpec((tr, 128), lambda i: (i, 0)),    # x tiles: streamed, lane-dense
            pl.BlockSpec((128, GH), lambda i: (0, 0)),    # packed fc1 weight: resident
            pl.BlockSpec((1, GH), lambda i: (0, 0)),      # packed fc1 bias: resident
            pl.BlockSpec((GH, G), lambda i: (0, 0)),      # packed fc2 weight: resident
            pl.BlockSpec(memory_space=pltpu.MemorySpace.SMEM),  # fc2 bias scalar
        ],
        out_specs=pl.BlockSpec((tr, G), lambda i: (i, 0)),
        compiler_params=pltpu.CompilerParams(
            dimension_semantics=("parallel",),            # megacore sharding on v7x
            vmem_limit_bytes=32 * 1024 * 1024,
        ),
        cost_estimate=cost,
    )(x_packed, w1_bd, b1_p, w2_bd, b2_p)

    # [R, G] is the contiguous flattened [B] vector; reshape is zero-cost.
    return out.reshape(B, 1)


def init_probnet_params(key, state_dim, hidden_dim, action_dim):
    """Deterministic init mimicking torch.nn.Linear default U(-1/sqrt(fan_in), +)."""
    in_dim = state_dim + action_dim
    k1, k2, k3, k4 = jax.random.split(key, 4)
    lim1 = 1.0 / jnp.sqrt(in_dim)
    lim2 = 1.0 / jnp.sqrt(hidden_dim)
    w1 = jax.random.uniform(k1, (in_dim, hidden_dim), jnp.float32, -lim1, lim1)
    b1 = jax.random.uniform(k2, (hidden_dim,), jnp.float32, -lim1, lim1)
    w2 = jax.random.uniform(k3, (hidden_dim,), jnp.float32, -lim2, lim2)
    b2 = jax.random.uniform(k4, (), jnp.float32, -lim2, lim2)
    return w1, b1, w2, b2


if __name__ == "__main__":
    state_dim, hidden_dim, action_dim = 6, 32, 2
    batch = 256   # small demo; with D=8 this packs into 16 lane-rows, 2 grid tiles

    key = jax.random.PRNGKey(0)
    kx, kp = jax.random.split(key)
    x = jax.random.normal(kx, (batch, state_dim + action_dim), jnp.float32)
    w1, b1, w2, b2 = init_probnet_params(kp, state_dim, hidden_dim, action_dim)

    out = probnet_forward(x, w1, b1, w2, b2, block_rows=8)   # small tile -> 2 tiles
    out = jax.block_until_ready(out)

    # Pure-JAX reference (same math as the PyTorch forward).
    ref = jnp.maximum(x @ w1 + b1[None, :], 0.0) @ w2[:, None] + b2
    assert out.shape == (batch, 1)
    err = float(jnp.max(jnp.abs(out - ref)))
    assert jnp.allclose(out, ref, atol=2e-3, rtol=2e-3), f"max abs err {err}"

    print("KERNEL_OK")
</pallas_src>

<mosaic_0001>
module attributes {stable_mosaic.version = 11 : i64} {
  func.func @probnet_kernel(%arg0: i32, %arg1: memref<8x128xf32, #tpu.memory_space<vmem>>, %arg2: memref<128x512xf32, #tpu.memory_space<vmem>>, %arg3: memref<1x512xf32, #tpu.memory_space<vmem>>, %arg4: memref<512x16xf32, #tpu.memory_space<vmem>>, %arg5: memref<1x1xf32, #tpu.memory_space<smem>>, %arg6: memref<8x16xf32, #tpu.memory_space<vmem>>) attributes {dimension_semantics = [#tpu.dimension_semantics<parallel>], iteration_bounds = array<i64: 2>, scalar_prefetch = 0 : i64, scratch_operands = 0 : i64, tpu.core_type = #tpu.core_type<tc>, window_params = [{transform_indices = @transform_0, window_bounds = array<i64: 8, 128>}, {pipeline_mode = #tpu.pipeline_mode<synchronous>, transform_indices = @transform_1, window_bounds = array<i64: 128, 512>}, {pipeline_mode = #tpu.pipeline_mode<synchronous>, transform_indices = @transform_2, window_bounds = array<i64: 1, 512>}, {pipeline_mode = #tpu.pipeline_mode<synchronous>, transform_indices = @transform_3, window_bounds = array<i64: 512, 16>}, {transform_indices = @transform_4, window_bounds = array<i64: 1, 1>}, {transform_indices = @transform_5, window_bounds = array<i64: 8, 16>}]} {
    %c0 = arith.constant 0 : index
    %c0_0 = arith.constant 0 : index
    %0 = vector.load %arg1[%c0, %c0_0] : memref<8x128xf32, #tpu.memory_space<vmem>>, vector<8x128xf32>
    %c0_1 = arith.constant 0 : index
    %c0_2 = arith.constant 0 : index
    %1 = vector.load %arg2[%c0_1, %c0_2] : memref<128x512xf32, #tpu.memory_space<vmem>>, vector<128x512xf32>
    %cst = arith.constant dense<0.000000e+00> : vector<8x512xf32>
    %2 = tpu.matmul %0, %1, %cst {dimension_numbers = #tpu.dot_dimension_numbers<[1], [0], [0], [1], [0, 0, 1, 1], [], []>} : vector<8x128xf32>, vector<128x512xf32>, vector<8x512xf32> -> vector<8x512xf32>
    %c0_3 = arith.constant 0 : index
    %c0_4 = arith.constant 0 : index
    %3 = vector.load %arg3[%c0_3, %c0_4] : memref<1x512xf32, #tpu.memory_space<vmem>>, vector<1x512xf32>
    %4 = vector.broadcast %3 : vector<1x512xf32> to vector<8x512xf32>
    %5 = arith.addf %2, %4 : vector<8x512xf32>
    %cst_5 = arith.constant 0.000000e+00 : f32
    %6 = vector.broadcast %cst_5 : f32 to vector<8x512xf32>
    %7 = arith.maximumf %5, %6 : vector<8x512xf32>
    %c0_6 = arith.constant 0 : index
    %c0_7 = arith.constant 0 : index
    %8 = vector.load %arg4[%c0_6, %c0_7] : memref<512x16xf32, #tpu.memory_space<vmem>>, vector<512x16xf32>
    %cst_8 = arith.constant dense<0.000000e+00> : vector<8x16xf32>
    %9 = tpu.matmul %7, %8, %cst_8 {dimension_numbers = #tpu.dot_dimension_numbers<[1], [0], [0], [1], [0, 0, 1, 1], [], []>} : vector<8x512xf32>, vector<512x16xf32>, vector<8x16xf32> -> vector<8x16xf32>
    %c0_9 = arith.constant 0 : index
    %c0_10 = arith.constant 0 : index
    %10 = memref.load %arg5[%c0_9, %c0_10] : memref<1x1xf32, #tpu.memory_space<smem>>
    %11 = vector.broadcast %10 : f32 to vector<8x16xf32>
    %12 = arith.addf %9, %11 : vector<8x16xf32>
    %c0_11 = arith.constant 0 : index
    %c0_12 = arith.constant 0 : index
    %13 = vector.load %arg6[%c0_11, %c0_12] : memref<8x16xf32, #tpu.memory_space<vmem>>, vector<8x16xf32>
    tpu.vector_store %arg6[%c0_11, %c0_12], %12 {strides = array<i32>} : memref<8x16xf32, #tpu.memory_space<vmem>>, vector<8x16xf32>,
    return
  }
  func.func @transform_0(%arg0: i32) -> (i32, i32) {
    %c0_i32 = arith.constant 0 : i32
    %c0_i32_0 = arith.constant 0 : i32
    return %arg0, %c0_i32 : i32, i32
  }
  func.func @transform_1(%arg0: i32) -> (i32, i32) {
    %c0_i32 = arith.constant 0 : i32
    %c0_i32_0 = arith.constant 0 : i32
    %c0_i32_1 = arith.constant 0 : i32
    return %c0_i32, %c0_i32_0 : i32, i32
  }
  func.func @transform_2(%arg0: i32) -> (i32, i32) {
    %c0_i32 = arith.constant 0 : i32
    %c0_i32_0 = arith.constant 0 : i32
    %c0_i32_1 = arith.constant 0 : i32
    return %c0_i32, %c0_i32_0 : i32, i32
  }
  func.func @transform_3(%arg0: i32) -> (i32, i32) {
    %c0_i32 = arith.constant 0 : i32
    %c0_i32_0 = arith.constant 0 : i32
    %c0_i32_1 = arith.constant 0 : i32
    return %c0_i32, %c0_i32_0 : i32, i32
  }
  func.func @transform_4(%arg0: i32) -> (i32, i32) {
    %c0_i32 = arith.constant 0 : i32
    %c0_i32_0 = arith.constant 0 : i32
    %c0_i32_1 = arith.constant 0 : i32
    return %c0_i32, %c0_i32_0 : i32, i32
  }
  func.func @transform_5(%arg0: i32) -> (i32, i32) {
    %c0_i32 = arith.constant 0 : i32
    %c0_i32_0 = arith.constant 0 : i32
    return %arg0, %c0_i32 : i32, i32
  }
}

</mosaic_0001>

<llo_original>
// kernel: probnet_forward.1
$region0: #{probnet_forward.1}
  #allocation0 [shape = 'u32[]', space=smem, size = 0x4, offset = 0x4, fixed_abs, tag = 'smem constant byte address 0x4 - core index']
  #allocation1 [shape = 'u32[144,128]{1,0:T(1,128)}', space=vmem, size = 0x12000, scoped, tag = 'internal scratch']
  #allocation2 [shape = 'f32[1,1]{1,0:T(1,128)S(6)}', space=smem, size = 0x200, scoped, tag = 'scoped memory for probnet_forward.1']
  %s0 = inlined_call_operand.vmem [shape: f32[16,128], index: 0, kind: input, shape index: {}]
  %s1 = inlined_call_operand.vmem [shape: f32[128,512], index: 1, kind: input, shape index: {}]
  %s2 = inlined_call_operand.vmem [shape: f32[1,512], index: 2, kind: input, shape index: {}]
  %s3 = inlined_call_operand.vmem [shape: f32[512,16], index: 3, kind: input, shape index: {}]
  %s4 = inlined_call_operand.<no memory space> [shape: f32[1,1], index: 4, kind: input, shape index: {}]
  %s5 = inlined_call_operand.vmem [shape: f32[16,16], index: 5, kind: output, shape index: {}]
  %s6 = sld [smem:[#allocation0]]
  $region53: #{probnet_forward.1} parent=0
    _
  %s8 = ssub.s32 1, %s6
  %s9 = scalar_select 0, %s8, %s6
  %10 = sst [smem:[#allocation2]] %s4
  loop: start=0, step=1, limit=4
  $region2: #{probnet_forward.1} parent=0 // loop_pre_header
    _
  $region3: #{probnet_forward.1} parent=0 // loop_header
    %s12 = sphi 0, %s16
    %p13 = scmp.ge.s32.totalorder %s12, 4
    %s22 = sphi 0, %s24
    %s25 = sphi 0, %s22
    %s26 = sphi 0, %s25
    %s42 = sphi 0, %s26
    %s46 = sphi 0, %s46
    %s48 = sphi 0, %s46
    %s49 = sphi 0, %s48
    %s63 = sphi 0, %s49
    %s67 = sphi 0, %s67
    %s69 = sphi 0, %s67
    %s70 = sphi 0, %s69
    %s84 = sphi 0, %s70
    %s88 = sphi 0, %s88
    %s90 = sphi 0, %s88
    %s91 = sphi 0, %s90
    %s105 = sphi 0, %s91
    %s109 = sphi 0, %s109
    %s111 = sphi 0, %s109
    %s112 = sphi 0, %s111
    %s126 = sphi 0, %s112
    %s132 = sphi 0, %s134
    %s135 = sphi 0, %s132
    %s136 = sphi 0, %s135
    %s152 = sphi 0, %s136
  $region4: #{probnet_forward.1} parent=0 // loop_header_branch
    %15 = sbr.rel (%p13) target = $region8
  $region5: #{probnet_forward.1} parent=0 // loop_body
    %s17 = ssub.s32 %s12, 1
    %s18 = ssub.s32 %s12, 2
    %s19 = sadd.s32 %s12, 1
    %s20 = ssub.s32 %s12, %s19
    %p21 = scmp.eq.s32.totalorder %s20, 0
    %s23 = sadd.s32 %s22, 1
    %s24 = scalar_select %p21, %s22, %s23
    %p27 = pneg %p21
    %p28 = scmp.eq.s32.totalorder %s12, 1
    %p29 = por %p27, %p28
    %p30 = scmp.ne.s32.totalorder %s22, %s25
    %p31 = scmp.eq.s32.totalorder %s12, 0
    %p32 = por %p30, %p31
    %p33 = scmp.ne.s32.totalorder %s22, %s25
    %p34 = scmp.eq.s32.totalorder %s17, 1
    %p35 = por %p33, %p34
    %p36 = scmp.ne.s32.totalorder %s25, %s26
    %p37 = scmp.eq.s32.totalorder %s17, 0
    %p38 = por %p36, %p37
    %p39 = scmp.ne.s32.totalorder %s25, %s26
    %p40 = scmp.eq.s32.totalorder %s18, 1
    %p41 = por %p39, %p40
    %p43 = scmp.ne.s32.totalorder %s26, %s42
    %p44 = scmp.eq.s32.totalorder %s18, 0
    %p45 = por %p43, %p44
    %s47 = sadd.s32 %s46, 1
    %p50 = scmp.eq.s32.totalorder %s12, 1
    %p51 = scmp.ne.s32.totalorder %s46, %s48
    %p52 = scmp.eq.s32.totalorder %s12, 0
    %p53 = por %p51, %p52
    %p54 = scmp.ne.s32.totalorder %s46, %s48
    %p55 = scmp.eq.s32.totalorder %s17, 1
    %p56 = por %p54, %p55
    %p57 = scmp.ne.s32.totalorder %s48, %s49
    %p58 = scmp.eq.s32.totalorder %s17, 0
    %p59 = por %p57, %p58
    %p60 = scmp.ne.s32.totalorder %s48, %s49
    %p61 = scmp.eq.s32.totalorder %s18, 1
    %p62 = por %p60, %p61
    %p64 = scmp.ne.s32.totalorder %s49, %s63
    %p65 = scmp.eq.s32.totalorder %s18, 0
    %p66 = por %p64, %p65
    %s68 = sadd.s32 %s67, 1
    %p71 = scmp.eq.s32.totalorder %s12, 1
    %p72 = scmp.ne.s32.totalorder %s67, %s69
    %p73 = scmp.eq.s32.totalorder %s12, 0
    %p74 = por %p72, %p73
    %p75 = scmp.ne.s32.totalorder %s67, %s69
    %p76 = scmp.eq.s32.totalorder %s17, 1
    %p77 = por %p75, %p76
    %p78 = scmp.ne.s32.totalorder %s69, %s70
    %p79 = scmp.eq.s32.totalorder %s17, 0
    %p80 = por %p78, %p79
    %p81 = scmp.ne.s32.totalorder %s69, %s70
    %p82 = scmp.eq.s32.totalorder %s18, 1
    %p83 = por %p81, %p82
    %p85 = scmp.ne.s32.totalorder %s70, %s84
    %p86 = scmp.eq.s32.totalorder %s18, 0
    %p87 = por %p85, %p86
    %s89 = sadd.s32 %s88, 1
    %p92 = scmp.eq.s32.totalorder %s12, 1
    %p93 = scmp.ne.s32.totalorder %s88, %s90
    %p94 = scmp.eq.s32.totalorder %s12, 0
    %p95 = por %p93, %p94
    %p96 = scmp.ne.s32.totalorder %s88, %s90
    %p97 = scmp.eq.s32.totalorder %s17, 1
    %p98 = por %p96, %p97
    %p99 = scmp.ne.s32.totalorder %s90, %s91
    %p100 = scmp.eq.s32.totalorder %s17, 0
    %p101 = por %p99, %p100
    %p102 = scmp.ne.s32.totalorder %s90, %s91
    %p103 = scmp.eq.s32.totalorder %s18, 1
    %p104 = por %p102, %p103
    %p106 = scmp.ne.s32.totalorder %s91, %s105
    %p107 = scmp.eq.s32.totalorder %s18, 0
    %p108 = por %p106, %p107
    %s110 = sadd.s32 %s109, 1
    %p113 = scmp.eq.s32.totalorder %s12, 1
    %p114 = scmp.ne.s32.totalorder %s109, %s111
    %p115 = scmp.eq.s32.totalorder %s12, 0
    %p116 = por %p114, %p115
    %p117 = scmp.ne.s32.totalorder %s109, %s111
    %p118 = scmp.eq.s32.totalorder %s17, 1
    %p119 = por %p117, %p118
    %p120 = scmp.ne.s32.totalorder %s111, %s112
    %p121 = scmp.eq.s32.totalorder %s17, 0
    %p122 = por %p120, %p121
    %p123 = scmp.ne.s32.totalorder %s111, %s112
    %p124 = scmp.eq.s32.totalorder %s18, 1
    %p125 = por %p123, %p124
    %p127 = scmp.ne.s32.totalorder %s112, %s126
    %p128 = scmp.eq.s32.totalorder %s18, 0
    %p129 = por %p127, %p128
    %s130 = ssub.s32 %s12, %s19
    %p131 = scmp.eq.s32.totalorder %s130, 0
    %s133 = sadd.s32 %s132, 1
    %s134 = scalar_select %p131, %s132, %s133
    %p137 = pneg %p131
    %p138 = scmp.eq.s32.totalorder %s12, 1
    %p139 = por %p137, %p138
    %p140 = scmp.ne.s32.totalorder %s132, %s135
    %p141 = scmp.eq.s32.totalorder %s12, 0
    %p142 = por %p140, %p141
    %p143 = scmp.ne.s32.totalorder %s132, %s135
    %p144 = scmp.eq.s32.totalorder %s17, 1
    %p145 = por %p143, %p144
    %p146 = scmp.ne.s32.totalorder %s135, %s136
    %p147 = scmp.eq.s32.totalorder %s17, 0
    %p148 = por %p146, %p147
    %p149 = scmp.ne.s32.totalorder %s135, %s136
    %p150 = scmp.eq.s32.totalorder %s18, 1
    %p151 = por %p149, %p150
    %p153 = scmp.ne.s32.totalorder %s136, %s152
    %p154 = scmp.eq.s32.totalorder %s18, 0
    %p155 = por %p153, %p154
    %p156 = scmp.le.s32.totalorder 1, %s12
    %p157 = scmp.lt.s32.totalorder %s12, 3
    %p158 = pnand %p156, %p157
    %p159 = pneg %p158
    // Predicated region
    $region9: #{probnet_forward.1} parent=5 // pred_check
      _
    $region10: #{probnet_forward.1} parent=5 // pred_check_branch
      %161 = sbr.rel (%p158) target = $region12
    $region11: #{probnet_forward.1} parent=5 // pred_region
      %s162 = ssub.s32 %s12, 1
      // Predicated region
      $region13: #{probnet_forward.1} parent=11 // pred_check
        %p163 = pneg %p59
      $region14: #{probnet_forward.1} parent=11 // pred_check_branch
        %165 = sbr.rel (%p163) target = $region16
      $region15: #{probnet_forward.1} parent=11 // pred_region
        _
      $region16: #{probnet_forward.1} parent=11 // pred_fallthru
        _
      // Predicated region
      $region17: #{probnet_forward.1} parent=11 // pred_check
        %p166 = pneg %p80
      $region18: #{probnet_forward.1} parent=11 // pred_check_branch
        %168 = sbr.rel (%p166) target = $region20
      $region19: #{probnet_forward.1} parent=11 // pred_region
        _
      $region20: #{probnet_forward.1} parent=11 // pred_fallthru
        _
      // Predicated region
      $region21: #{probnet_forward.1} parent=11 // pred_check
        %p169 = pneg %p101
      $region22: #{probnet_forward.1} parent=11 // pred_check_branch
        %171 = sbr.rel (%p169) target = $region24
      $region23: #{probnet_forward.1} parent=11 // pred_region
        _
      $region24: #{probnet_forward.1} parent=11 // pred_fallthru
        _
      // Predicated region
      $region25: #{probnet_forward.1} parent=11 // pred_check
        %p172 = pneg %p122
      $region26: #{probnet_forward.1} parent=11 // pred_check_branch
        %174 = sbr.rel (%p172) target = $region28
      $region27: #{probnet_forward.1} parent=11 // pred_region
        _
      $region28: #{probnet_forward.1} parent=11 // pred_fallthru
        _
    $region12: #{probnet_forward.1} parent=5 // pred_fallthru
      _
    %p175 = scmp.lt.s32.totalorder %s12, 2
    // Predicated region
    $region29: #{probnet_forward.1} parent=5 // pred_check
      %p176 = pneg %p175
    $region30: #{probnet_forward.1} parent=5 // pred_check_branch
      %178 = sbr.rel (%p176) target = $region32
    $region31: #{probnet_forward.1} parent=5 // pred_region
      // Predicated region
      $region33: #{probnet_forward.1} parent=31 // pred_check
        %p179 = pneg %p32
      $region34: #{probnet_forward.1} parent=31 // pred_check_branch
        %181 = sbr.rel (%p179) target = $region36
      $region35: #{probnet_forward.1} parent=31 // pred_region
        %p182 = scmp.lt.s32.totalorder %s12, 1
        %s183 = scalar_select %p182, %s12, 1
        %s184 = smul.addr %s183, 8
        %s185 = scalar_lea.vmem %s0, %s184
      $region36: #{probnet_forward.1} parent=31 // pred_fallthru
        _
    $region32: #{probnet_forward.1} parent=5 // pred_fallthru
      _
    %p186 = scmp.le.s32.totalorder 1, %s12
    %p187 = scmp.lt.s32.totalorder %s12, 3
    %p188 = pnand %p186, %p187
    %p189 = pneg %p188
    // Predicated region
    $region37: #{probnet_forward.1} parent=5 // pred_check
      _
    $region38: #{probnet_forward.1} parent=5 // pred_check_branch
      %191 = sbr.rel (%p188) target = $region40
    $region39: #{probnet_forward.1} parent=5 // pred_region
      %s192 = ssub.s32 %s12, 1
      %p193 = scmp.lt.s32.totalorder %s17, 1
      %s194 = scalar_select %p193, %s17, 1
      %s195 = smul.addr %s194, 8
      %s196 = scalar_lea.vmem %s0, %s195
      %p197 = pneg %p38
      %p198 = pneg %p35
      %p199 = pneg %p59
      %p200 = pneg %p56
      %p201 = pneg %p80
      %p202 = pneg %p77
      %p203 = pneg %p101
      %p204 = pneg %p98
      %p205 = pneg %p122
      %p206 = pneg %p119
      %p207 = pneg %p148
      %p208 = pneg %p145
      %p209 = scmp.lt.s32.totalorder %s17, 1
      %s210 = scalar_select %p209, %s17, 1
      %s211 = smul.addr %s210, 8
      %s212 = scalar_lea.vmem %s5, %s211
      %p213 = scmp.lt.s32.totalorder %s17, 1
      %s214 = scalar_select %p213, %s17, 1
      %s215 = smul.addr %s214, 8
      %s216 = scalar_lea.vmem %s0, %s215
      %p217 = scmp.lt.s32.totalorder %s17, 1
      %s218 = scalar_select %p217, %s17, 1
      %s219 = smul.addr %s218, 8
      %s220 = scalar_lea.vmem %s5, %s219
      %v221 = vld [vmem:[%s216] sm:$0xff]
      %v222 = vld [vmem:[%s1] sm:$0xff]
      %v223 = vld [vmem:[%s1 + $0x8] sm:$0xff]
      %v224 = vld [vmem:[%s1 + $0x10] sm:$0xff]
      %v225 = vld [vmem:[%s1 + $0x18] sm:$0xff]
      %v226 = vld [vmem:[%s1 + $0x20] sm:$0xff]
      %v227 = vld [vmem:[%s1 + $0x28] sm:$0xff]
      %v228 = vld [vmem:[%s1 + $0x30] sm:$0xff]
      %v229 = vld [vmem:[%s1 + $0x38] sm:$0xff]
      %v230 = vld [vmem:[%s1 + $0x40] sm:$0xff]
      %v231 = vld [vmem:[%s1 + $0x48] sm:$0xff]
      %v232 = vld [vmem:[%s1 + $0x50] sm:$0xff]
      %v233 = vld [vmem:[%s1 + $0x58] sm:$0xff]
      %v234 = vld [vmem:[%s1 + $0x60] sm:$0xff]
      %v235 = vld [vmem:[%s1 + $0x68] sm:$0xff]
      %v236 = vld [vmem:[%s1 + $0x70] sm:$0xff]
      %v237 = vld [vmem:[%s1 + $0x78] sm:$0xff]
      %v238 = vld [vmem:[%s1 + $0x80] sm:$0xff]
      %v239 = vld [vmem:[%s1 + $0x88] sm:$0xff]
      %v240 = vld [vmem:[%s1 + $0x90] sm:$0xff]
      %v241 = vld [vmem:[%s1 + $0x98] sm:$0xff]
      %v242 = vld [vmem:[%s1 + $0xa0] sm:$0xff]
      %v243 = vld [vmem:[%s1 + $0xa8] sm:$0xff]
      %v244 = vld [vmem:[%s1 + $0xb0] sm:$0xff]
      %v245 = vld [vmem:[%s1 + $0xb8] sm:$0xff]
      %v246 = vld [vmem:[%s1 + $0xc0] sm:$0xff]
      %v247 = vld [vmem:[%s1 + $0xc8] sm:$0xff]
      %v248 = vld [vmem:[%s1 + $0xd0] sm:$0xff]
      %v249 = vld [vmem:[%s1 + $0xd8] sm:$0xff]
      %v250 = vld [vmem:[%s1 + $0xe0] sm:$0xff]
      %v251 = vld [vmem:[%s1 + $0xe8] sm:$0xff]
      %v252 = vld [vmem:[%s1 + $0xf0] sm:$0xff]
      %v253 = vld [vmem:[%s1 + $0xf8] sm:$0xff]
      %v254 = vld [vmem:[%s1 + $0x100] sm:$0xff]
      %v255 = vld [vmem:[%s1 + $0x108] sm:$0xff]
      %v256 = vld [vmem:[%s1 + $0x110] sm:$0xff]
      %v257 = vld [vmem:[%s1 + $0x118] sm:$0xff]
      %v258 = vld [vmem:[%s1 + $0x120] sm:$0xff]
      %v259 = vld [vmem:[%s1 + $0x128] sm:$0xff]
      %v260 = vld [vmem:[%s1 + $0x130] sm:$0xff]
      %v261 = vld [vmem:[%s1 + $0x138] sm:$0xff]
      %v262 = vld [vmem:[%s1 + $0x140] sm:$0xff]
      %v263 = vld [vmem:[%s1 + $0x148] sm:$0xff]
      %v264 = vld [vmem:[%s1 + $0x150] sm:$0xff]
      %v265 = vld [vmem:[%s1 + $0x158] sm:$0xff]
      %v266 = vld [vmem:[%s1 + $0x160] sm:$0xff]
      %v267 = vld [vmem:[%s1 + $0x168] sm:$0xff]
      %v268 = vld [vmem:[%s1 + $0x170] sm:$0xff]
      %v269 = vld [vmem:[%s1 + $0x178] sm:$0xff]
      %v270 = vld [vmem:[%s1 + $0x180] sm:$0xff]
      %v271 = vld [vmem:[%s1 + $0x188] sm:$0xff]
      %v272 = vld [vmem:[%s1 + $0x190] sm:$0xff]
      %v273 = vld [vmem:[%s1 + $0x198] sm:$0xff]
      %v274 = vld [vmem:[%s1 + $0x1a0] sm:$0xff]
      %v275 = vld [vmem:[%s1 + $0x1a8] sm:$0xff]
      %v276 = vld [vmem:[%s1 + $0x1b0] sm:$0xff]
      %v277 = vld [vmem:[%s1 + $0x1b8] sm:$0xff]
      %v278 = vld [vmem:[%s1 + $0x1c0] sm:$0xff]
      %v279 = vld [vmem:[%s1 + $0x1c8] sm:$0xff]
      %v280 = vld [vmem:[%s1 + $0x1d0] sm:$0xff]
      %v281 = vld [vmem:[%s1 + $0x1d8] sm:$0xff]
      %v282 = vld [vmem:[%s1 + $0x1e0] sm:$0xff]
      %v283 = vld [vmem:[%s1 + $0x1e8] sm:$0xff]
      %v284 = vld [vmem:[%s1 + $0x1f0] sm:$0xff]
      %v285 = vld [vmem:[%s1 + $0x1f8] sm:$0xff]
      %v286 = vld [vmem:[%s2] sm:$0xf]
      %v288 = vlaneseq
      %v289 = vshrl.u32 %v288, 7
      %v290 = vsub.s32 0, %v289
      %v291 = vrot.slane %v286, %v290
      %v292 = vlaneseq
      %v293 = vshrl.u32 %v292, 7
      %v294 = vsub.s32 1, %v293
      %v295 = vrot.slane %v286, %v294
      %v296 = vlaneseq
      %v297 = vshrl.u32 %v296, 7
      %v298 = vsub.s32 2, %v297
      %v299 = vrot.slane %v286, %v298
      %v300 = vlaneseq
      %v301 = vshrl.u32 %v300, 7
      %v302 = vsub.s32 3, %v301
      %v303 = vrot.slane %v286, %v302
      %308 = vmatprep.subr.mxu0 %v283
      %309 = vmatpush1.msra.mxu0 %v282
      %310 = vmatprep.subr.mxu0 %v279
      %311 = vmatpush1.msra.mxu0 %v278
      %312 = vmatprep.subr.mxu0 %v275
      %313 = vmatpush1.msra.mxu0 %v274
      %314 = vmatprep.subr.mxu0 %v271
      %315 = vmatpush1.msra.mxu0 %v270
      %316 = vmatprep.subr.mxu0 %v267
      %317 = vmatpush1.msra.mxu0 %v266
      %318 = vmatprep.subr.mxu0 %v263
      %319 = vmatpush1.msra.mxu0 %v262
      %320 = vmatprep.subr.mxu0 %v259
      %321 = vmatpush1.msra.mxu0 %v258
      %322 = vmatprep.subr.mxu0 %v255
      %323 = vmatpush1.msra.mxu0 %v254
      %324 = vmatprep.subr.mxu0 %v251
      %325 = vmatpush1.msra.mxu0 %v250
      %326 = vmatprep.subr.mxu0 %v247
      %327 = vmatpush1.msra.mxu0 %v246
      %328 = vmatprep.subr.mxu0 %v243
      %329 = vmatpush1.msra.mxu0 %v242
      %330 = vmatprep.subr.mxu0 %v239
      %331 = vmatpush1.msra.mxu0 %v238
      %332 = vmatprep.subr.mxu0 %v235
      %333 = vmatpush1.msra.mxu0 %v234
      %334 = vmatprep.subr.mxu0 %v231
      %335 = vmatpush1.msra.mxu0 %v230
      %336 = vmatprep.subr.mxu0 %v227
      %337 = vmatpush1.msra.mxu0 %v226
      %338 = vmatprep.subr.mxu0 %v223
      %339 = vmatpush1.msra.mxu0 %v222
      %340 = vmatprep.subr.mxu0 0.0
      %341 = vmatpush2.msra.mxu0 0.0
      %342 = vmatprep.subr.mxu0 0.0
      %343 = vmatpush2.msra.mxu0 0.0
      %344 = vmatprep.subr.mxu0 0.0
      %345 = vmatpush2.msra.mxu0 0.0
      %346 = vmatprep.subr.mxu0 0.0
      %347 = vmatpush2.msra.mxu0 0.0
      %348 = vmatprep.subr.mxu0 0.0
      %349 = vmatpush2.msra.mxu0 0.0
      %350 = vmatprep.subr.mxu0 0.0
      %351 = vmatpush2.msra.mxu0 0.0
      %352 = vmatprep.subr.mxu0 0.0
      %353 = vmatpush2.msra.mxu0 0.0
      %354 = vmatprep.subr.mxu0 0.0
      %355 = vmatpush2.msra.mxu0 0.0
      %356 = vmatprep.subr.mxu0 0.0
      %357 = vmatpush2.msra.mxu0 0.0
      %358 = vmatprep.subr.mxu0 0.0
      %359 = vmatpush2.msra.mxu0 0.0
      %360 = vmatprep.subr.mxu0 0.0
      %361 = vmatpush2.msra.mxu0 0.0
      %362 = vmatprep.subr.mxu0 0.0
      %363 = vmatpush2.msra.mxu0 0.0
      %364 = vmatprep.subr.mxu0 0.0
      %365 = vmatpush2.msra.mxu0 0.0
      %366 = vmatprep.subr.mxu0 0.0
      %367 = vmatpush2.msra.mxu0 0.0
      %368 = vmatprep.subr.mxu0 0.0
      %369 = vmatpush2.msra.mxu0 0.0
      %370 = vmatprep.subr.mxu0 0.0
      %371 = vmatpush2.msra.mxu0 0.0
      %372 = vmatprep.mubr.f32.mxu0 0.0
      %373 = vmatmul.mubr.f32.gmra.mxu0 %v221
      %v374 = vpop.f32.mrf.mxu0
      %v375 = vadd.f32 %v291, %v374
      %v376 = vpop.f32.mrf.mxu0
      %v377 = vadd.f32 %v295, %v376
      %378 = vdwg.mxu0
      %379 = vmatprep.subr.mxu0 %v285
      %380 = vmatpush1.msra.mxu0 %v284
      %381 = vmatprep.subr.mxu0 %v281
      %382 = vmatpush1.msra.mxu0 %v280
      %383 = vmatprep.subr.mxu0 %v277
      %384 = vmatpush1.msra.mxu0 %v276
      %385 = vmatprep.subr.mxu0 %v273
      %386 = vmatpush1.msra.mxu0 %v272
      %387 = vmatprep.subr.mxu0 %v269
      %388 = vmatpush1.msra.mxu0 %v268
      %389 = vmatprep.subr.mxu0 %v265
      %390 = vmatpush1.msra.mxu0 %v264
      %391 = vmatprep.subr.mxu0 %v261
      %392 = vmatpush1.msra.mxu0 %v260
      %393 = vmatprep.subr.mxu0 %v257
      %394 = vmatpush1.msra.mxu0 %v256
      %395 = vmatprep.subr.mxu0 %v253
      %396 = vmatpush1.msra.mxu0 %v252
      %397 = vmatprep.subr.mxu0 %v249
      %398 = vmatpush1.msra.mxu0 %v248
      %399 = vmatprep.subr.mxu0 %v245
      %400 = vmatpush1.msra.mxu0 %v244
      %401 = vmatprep.subr.mxu0 %v241
      %402 = vmatpush1.msra.mxu0 %v240
      %403 = vmatprep.subr.mxu0 %v237
      %404 = vmatpush1.msra.mxu0 %v236
      %405 = vmatprep.subr.mxu0 %v233
      %406 = vmatpush1.msra.mxu0 %v232
      %407 = vmatprep.subr.mxu0 %v229
      %408 = vmatpush1.msra.mxu0 %v228
      %409 = vmatprep.subr.mxu0 %v225
      %410 = vmatpush1.msra.mxu0 %v224
      %411 = vmatprep.subr.mxu0 0.0
      %412 = vmatpush2.msra.mxu0 0.0
      %413 = vmatprep.subr.mxu0 0.0
      %414 = vmatpush2.msra.mxu0 0.0
      %415 = vmatprep.subr.mxu0 0.0
      %416 = vmatpush2.msra.mxu0 0.0
      %417 = vmatprep.subr.mxu0 0.0
      %418 = vmatpush2.msra.mxu0 0.0
      %419 = vmatprep.subr.mxu0 0.0
      %420 = vmatpush2.msra.mxu0 0.0
      %421 = vmatprep.subr.mxu0 0.0
      %422 = vmatpush2.msra.mxu0 0.0
      %423 = vmatprep.subr.mxu0 0.0
      %424 = vmatpush2.msra.mxu0 0.0
      %425 = vmatprep.subr.mxu0 0.0
      %426 = vmatpush2.msra.mxu0 0.0
      %427 = vmatprep.subr.mxu0 0.0
      %428 = vmatpush2.msra.mxu0 0.0
      %429 = vmatprep.subr.mxu0 0.0
      %430 = vmatpush2.msra.mxu0 0.0
      %431 = vmatprep.subr.mxu0 0.0
      %432 = vmatpush2.msra.mxu0 0.0
      %433 = vmatprep.subr.mxu0 0.0
      %434 = vmatpush2.msra.mxu0 0.0
      %435 = vmatprep.subr.mxu0 0.0
      %436 = vmatpush2.msra.mxu0 0.0
      %437 = vmatprep.subr.mxu0 0.0
      %438 = vmatpush2.msra.mxu0 0.0
      %439 = vmatprep.subr.mxu0 0.0
      %440 = vmatpush2.msra.mxu0 0.0
      %441 = vmatprep.subr.mxu0 0.0
      %442 = vmatpush2.msra.mxu0 0.0
      %443 = vmatprep.mubr.f32.mxu0 0.0
      %444 = vmatmul.mubr.f32.gmra.mxu0 %v221
      %v445 = vpop.f32.mrf.mxu0
      %v446 = vadd.f32 %v299, %v445
      %v447 = vpop.f32.mrf.mxu0
      %v448 = vadd.f32 %v303, %v447
      %449 = vdwg.mxu0
      %v450 = vmax.f32 %v375, 0.0
      %v451 = vmax.f32 %v377, 0.0
      %v452 = vmax.f32 %v446, 0.0
      %v453 = vmax.f32 %v448, 0.0
      %v454 = vld [vmem:[%s3] sm:$0xff]
      %v455 = vld [vmem:[%s3 + $0x8] sm:$0xff]
      %v456 = vld [vmem:[%s3 + $0x10] sm:$0xff]
      %v457 = vld [vmem:[%s3 + $0x18] sm:$0xff]
      %v458 = vld [vmem:[%s3 + $0x20] sm:$0xff]
      %v459 = vld [vmem:[%s3 + $0x28] sm:$0xff]
      %v460 = vld [vmem:[%s3 + $0x30] sm:$0xff]
      %v461 = vld [vmem:[%s3 + $0x38] sm:$0xff]
      %v462 = vld [vmem:[%s3 + $0x40] sm:$0xff]
      %v463 = vld [vmem:[%s3 + $0x48] sm:$0xff]
      %v464 = vld [vmem:[%s3 + $0x50] sm:$0xff]
      %v465 = vld [vmem:[%s3 + $0x58] sm:$0xff]
      %v466 = vld [vmem:[%s3 + $0x60] sm:$0xff]
      %v467 = vld [vmem:[%s3 + $0x68] sm:$0xff]
      %v468 = vld [vmem:[%s3 + $0x70] sm:$0xff]
      %v469 = vld [vmem:[%s3 + $0x78] sm:$0xff]
      %v470 = vld [vmem:[%s3 + $0x80] sm:$0xff]
      %v471 = vld [vmem:[%s3 + $0x88] sm:$0xff]
      %v472 = vld [vmem:[%s3 + $0x90] sm:$0xff]
      %v473 = vld [vmem:[%s3 + $0x98] sm:$0xff]
      %v474 = vld [vmem:[%s3 + $0xa0] sm:$0xff]
      %v475 = vld [vmem:[%s3 + $0xa8] sm:$0xff]
      %v476 = vld [vmem:[%s3 + $0xb0] sm:$0xff]
      %v477 = vld [vmem:[%s3 + $0xb8] sm:$0xff]
      %v478 = vld [vmem:[%s3 + $0xc0] sm:$0xff]
      %v479 = vld [vmem:[%s3 + $0xc8] sm:$0xff]
      %v480 = vld [vmem:[%s3 + $0xd0] sm:$0xff]
      %v481 = vld [vmem:[%s3 + $0xd8] sm:$0xff]
      %v482 = vld [vmem:[%s3 + $0xe0] sm:$0xff]
      %v483 = vld [vmem:[%s3 + $0xe8] sm:$0xff]
      %v484 = vld [vmem:[%s3 + $0xf0] sm:$0xff]
      %v485 = vld [vmem:[%s3 + $0xf8] sm:$0xff]
      %v486 = vld [vmem:[%s3 + $0x100] sm:$0xff]
      %v487 = vld [vmem:[%s3 + $0x108] sm:$0xff]
      %v488 = vld [vmem:[%s3 + $0x110] sm:$0xff]
      %v489 = vld [vmem:[%s3 + $0x118] sm:$0xff]
      %v490 = vld [vmem:[%s3 + $0x120] sm:$0xff]
      %v491 = vld [vmem:[%s3 + $0x128] sm:$0xff]
      %v492 = vld [vmem:[%s3 + $0x130] sm:$0xff]
      %v493 = vld [vmem:[%s3 + $0x138] sm:$0xff]
      %v494 = vld [vmem:[%s3 + $0x140] sm:$0xff]
      %v495 = vld [vmem:[%s3 + $0x148] sm:$0xff]
      %v496 = vld [vmem:[%s3 + $0x150] sm:$0xff]
      %v497 = vld [vmem:[%s3 + $0x158] sm:$0xff]
      %v498 = vld [vmem:[%s3 + $0x160] sm:$0xff]
      %v499 = vld [vmem:[%s3 + $0x168] sm:$0xff]
      %v500 = vld [vmem:[%s3 + $0x170] sm:$0xff]
      %v501 = vld [vmem:[%s3 + $0x178] sm:$0xff]
      %v502 = vld [vmem:[%s3 + $0x180] sm:$0xff]
      %v503 = vld [vmem:[%s3 + $0x188] sm:$0xff]
      %v504 = vld [vmem:[%s3 + $0x190] sm:$0xff]
      %v505 = vld [vmem:[%s3 + $0x198] sm:$0xff]
      %v506 = vld [vmem:[%s3 + $0x1a0] sm:$0xff]
      %v507 = vld [vmem:[%s3 + $0x1a8] sm:$0xff]
      %v508 = vld [vmem:[%s3 + $0x1b0] sm:$0xff]
      %v509 = vld [vmem:[%s3 + $0x1b8] sm:$0xff]
      %v510 = vld [vmem:[%s3 + $0x1c0] sm:$0xff]
      %v511 = vld [vmem:[%s3 + $0x1c8] sm:$0xff]
      %v512 = vld [vmem:[%s3 + $0x1d0] sm:$0xff]
      %v513 = vld [vmem:[%s3 + $0x1d8] sm:$0xff]
      %v514 = vld [vmem:[%s3 + $0x1e0] sm:$0xff]
      %v515 = vld [vmem:[%s3 + $0x1e8] sm:$0xff]
      %v516 = vld [vmem:[%s3 + $0x1f0] sm:$0xff]
      %v517 = vld [vmem:[%s3 + $0x1f8] sm:$0xff]
      %s518 = sld [smem:[#allocation2]]
      %v519 = vstv %s518
      %520 = vmatprep.subr.mxu0 0.0
      %521 = vmatpush1.msra.mxu0 %v469
      %522 = vmatprep.subr.mxu0 0.0
      %523 = vmatpush1.msra.mxu0 %v468
      %524 = vmatprep.subr.mxu0 0.0
      %525 = vmatpush1.msra.mxu0 %v467
      %526 = vmatprep.subr.mxu0 0.0
      %527 = vmatpush1.msra.mxu0 %v466
      %528 = vmatprep.subr.mxu0 0.0
      %529 = vmatpush1.msra.mxu0 %v465
      %530 = vmatprep.subr.mxu0 0.0
      %531 = vmatpush1.msra.mxu0 %v464
      %532 = vmatprep.subr.mxu0 0.0
      %533 = vmatpush1.msra.mxu0 %v463
      %534 = vmatprep.subr.mxu0 0.0
      %535 = vmatpush1.msra.mxu0 %v462
      %536 = vmatprep.subr.mxu0 0.0
      %537 = vmatpush1.msra.mxu0 %v461
      %538 = vmatprep.subr.mxu0 0.0
      %539 = vmatpush1.msra.mxu0 %v460
      %540 = vmatprep.subr.mxu0 0.0
      %541 = vmatpush1.msra.mxu0 %v459
      %542 = vmatprep.subr.mxu0 0.0
      %543 = vmatpush1.msra.mxu0 %v458
      %544 = vmatprep.subr.mxu0 0.0
      %545 = vmatpush1.msra.mxu0 %v457
      %546 = vmatprep.subr.mxu0 0.0
      %547 = vmatpush1.msra.mxu0 %v456
      %548 = vmatprep.subr.mxu0 0.0
      %549 = vmatpush1.msra.mxu0 %v455
      %550 = vmatprep.subr.mxu0 0.0
      %551 = vmatpush1.msra.mxu0 %v454
      %552 = vmatprep.subr.mxu0 0.0
      %553 = vmatpush2.msra.mxu0 %v485
      %554 = vmatprep.subr.mxu0 0.0
      %555 = vmatpush2.msra.mxu0 %v484
      %556 = vmatprep.subr.mxu0 0.0
      %557 = vmatpush2.msra.mxu0 %v483
      %558 = vmatprep.subr.mxu0 0.0
      %559 = vmatpush2.msra.mxu0 %v482
      %560 = vmatprep.subr.mxu0 0.0
      %561 = vmatpush2.msra.mxu0 %v481
      %562 = vmatprep.subr.mxu0 0.0
      %563 = vmatpush2.msra.mxu0 %v480
      %564 = vmatprep.subr.mxu0 0.0
      %565 = vmatpush2.msra.mxu0 %v479
      %566 = vmatprep.subr.mxu0 0.0
      %567 = vmatpush2.msra.mxu0 %v478
      %568 = vmatprep.subr.mxu0 0.0
      %569 = vmatpush2.msra.mxu0 %v477
      %570 = vmatprep.subr.mxu0 0.0
      %571 = vmatpush2.msra.mxu0 %v476
      %572 = vmatprep.subr.mxu0 0.0
      %573 = vmatpush2.msra.mxu0 %v475
      %574 = vmatprep.subr.mxu0 0.0
      %575 = vmatpush2.msra.mxu0 %v474
      %576 = vmatprep.subr.mxu0 0.0
      %577 = vmatpush2.msra.mxu0 %v473
      %578 = vmatprep.subr.mxu0 0.0
      %579 = vmatpush2.msra.mxu0 %v472
      %580 = vmatprep.subr.mxu0 0.0
      %581 = vmatpush2.msra.mxu0 %v471
      %582 = vmatprep.subr.mxu0 0.0
      %583 = vmatpush2.msra.mxu0 %v470
      %584 = vmatprep.mubr.f32.mxu0 %v451
      %585 = vmatmul.mubr.f32.gmra.mxu0 %v450
      %v586 = vpop.f32.mrf.mxu0
      %v587 = vadd.f32 %v519, %v586
      %v588 = vpop.f32.mrf.mxu0
      %589 = vdwg.mxu0
      %590 = vmatprep.subr.mxu0 0.0
      %591 = vmatpush1.msra.mxu0 %v501
      %592 = vmatprep.subr.mxu0 0.0
      %593 = vmatpush1.msra.mxu0 %v500
      %594 = vmatprep.subr.mxu0 0.0
      %595 = vmatpush1.msra.mxu0 %v499
      %596 = vmatprep.subr.mxu0 0.0
      %597 = vmatpush1.msra.mxu0 %v498
      %598 = vmatprep.subr.mxu0 0.0
      %599 = vmatpush1.msra.mxu0 %v497
      %600 = vmatprep.subr.mxu0 0.0
      %601 = vmatpush1.msra.mxu0 %v496
      %602 = vmatprep.subr.mxu0 0.0
      %603 = vmatpush1.msra.mxu0 %v495
      %604 = vmatprep.subr.mxu0 0.0
      %605 = vmatpush1.msra.mxu0 %v494
      %606 = vmatprep.subr.mxu0 0.0
      %607 = vmatpush1.msra.mxu0 %v493
      %608 = vmatprep.subr.mxu0 0.0
      %609 = vmatpush1.msra.mxu0 %v492
      %610 = vmatprep.subr.mxu0 0.0
      %611 = vmatpush1.msra.mxu0 %v491
      %612 = vmatprep.subr.mxu0 0.0
      %613 = vmatpush1.msra.mxu0 %v490
      %614 = vmatprep.subr.mxu0 0.0
      %615 = vmatpush1.msra.mxu0 %v489
      %616 = vmatprep.subr.mxu0 0.0
      %617 = vmatpush1.msra.mxu0 %v488
      %618 = vmatprep.subr.mxu0 0.0
      %619 = vmatpush1.msra.mxu0 %v487
      %620 = vmatprep.subr.mxu0 0.0
      %621 = vmatpush1.msra.mxu0 %v486
      %622 = vmatprep.subr.mxu0 0.0
      %623 = vmatpush2.msra.mxu0 %v517
      %624 = vmatprep.subr.mxu0 0.0
      %625 = vmatpush2.msra.mxu0 %v516
      %626 = vmatprep.subr.mxu0 0.0
      %627 = vmatpush2.msra.mxu0 %v515
      %628 = vmatprep.subr.mxu0 0.0
      %629 = vmatpush2.msra.mxu0 %v514
      %630 = vmatprep.subr.mxu0 0.0
      %631 = vmatpush2.msra.mxu0 %v513
      %632 = vmatprep.subr.mxu0 0.0
      %633 = vmatpush2.msra.mxu0 %v512
      %634 = vmatprep.subr.mxu0 0.0
      %635 = vmatpush2.msra.mxu0 %v511
      %636 = vmatprep.subr.mxu0 0.0
      %637 = vmatpush2.msra.mxu0 %v510
      %638 = vmatprep.subr.mxu0 0.0
      %639 = vmatpush2.msra.mxu0 %v509
      %640 = vmatprep.subr.mxu0 0.0
      %641 = vmatpush2.msra.mxu0 %v508
      %642 = vmatprep.subr.mxu0 0.0
      %643 = vmatpush2.msra.mxu0 %v507
      %644 = vmatprep.subr.mxu0 0.0
      %645 = vmatpush2.msra.mxu0 %v506
      %646 = vmatprep.subr.mxu0 0.0
      %647 = vmatpush2.msra.mxu0 %v505
      %648 = vmatprep.subr.mxu0 0.0
      %649 = vmatpush2.msra.mxu0 %v504
      %650 = vmatprep.subr.mxu0 0.0
      %651 = vmatpush2.msra.mxu0 %v503
      %652 = vmatprep.subr.mxu0 0.0
      %653 = vmatpush2.msra.mxu0 %v502
      %654 = vmatprep.mubr.f32.mxu0 %v453
      %655 = vmatmul.mubr.f32.gmra.mxu0 %v452
      %v656 = vpop.f32.mrf.mxu0
      %v657 = vadd.f32 %v587, %v656
      %v658 = vpop.f32.mrf.mxu0
      %659 = vdwg.mxu0
      %vm660 = vcmask 130048
      %661 = vst.msk [vmem:[%s220] sm:$0xff] %vm660, %v657
      %p662 = scmp.lt.s32.totalorder %s17, 1
      %s663 = scalar_select %p662, %s17, 1
      %s664 = smul.addr %s663, 8
      %s665 = scalar_lea.vmem %s5, %s664
      // Predicated region
      $region41: #{probnet_forward.1} parent=39 // pred_check
        %p666 = pneg %p145
      $region42: #{probnet_forward.1} parent=39 // pred_check_branch
        %668 = sbr.rel (%p666) target = $region44
      $region43: #{probnet_forward.1} parent=39 // pred_region
        _
      $region44: #{probnet_forward.1} parent=39 // pred_fallthru
        _
    $region40: #{probnet_forward.1} parent=5 // pred_fallthru
      _
    %p669 = scmp.le.s32.totalorder 2, %s12
    // Predicated region
    $region45: #{probnet_forward.1} parent=5 // pred_check
      %p670 = pneg %p669
    $region46: #{probnet_forward.1} parent=5 // pred_check_branch
      %672 = sbr.rel (%p670) target = $region48
    $region47: #{probnet_forward.1} parent=5 // pred_region
      %s673 = ssub.s32 %s12, 2
      // Predicated region
      $region49: #{probnet_forward.1} parent=47 // pred_check
        %p674 = pneg %p151
      $region50: #{probnet_forward.1} parent=47 // pred_check_branch
        %676 = sbr.rel (%p674) target = $region52
      $region51: #{probnet_forward.1} parent=47 // pred_region
        %p677 = scmp.lt.s32.totalorder %s18, 1
        %s678 = scalar_select %p677, %s18, 1
        %s679 = smul.addr %s678, 8
        %s680 = scalar_lea.vmem %s5, %s679
      $region52: #{probnet_forward.1} parent=47 // pred_fallthru
        _
    $region48: #{probnet_forward.1} parent=5 // pred_fallthru
      _
  $region6: #{probnet_forward.1} parent=0 // loop_footer
    %s16 = sadd.s32 1, %s12
  $region7: #{probnet_forward.1} parent=0 // loop_footer_branch
    %11 = sbr.rel target = $region3
  $region8: #{probnet_forward.1} parent=0 // loop_exit
    _

</llo_original>
